<compile_context>
chip_gen: v5e
topology: v5e:2x2
jax: 0.10.0
libtpu: 0.0.40
codegen_flags: <defaults>
</compile_context>

<pallas_src>
import jax
import jax.numpy as jnp
from jax.experimental import pallas as pl
from jax.experimental.pallas import tpu as pltpu


def two_layer_encoder_kernel(x_ref, w1_ref, b1_ref, w2_ref, b2_ref, out_ref):
    # Layer 1: Linear(num_input -> num_dim_1) + ReLU.
    # bf16 MXU operands, f32 accumulation, f32 epilogue.
    x = x_ref[...].astype(jnp.bfloat16)                               # (tb, num_input)
    h = jnp.dot(x, w1_ref[...], preferred_element_type=jnp.float32)   # (tb, d1) f32
    h = jnp.maximum(h + b1_ref[...], 0.0)

    # Layer 2: Linear(num_dim_1 -> num_dim_2) + ReLU.
    y = jnp.dot(h.astype(jnp.bfloat16), w2_ref[...],
                preferred_element_type=jnp.float32)                   # (tb, d2) f32
    out_ref[...] = jnp.maximum(y + b2_ref[...], 0.0).astype(out_ref.dtype)


def _round_up(n, m):
    return ((n + m - 1) // m) * m


def prepare_params(w1, b1, w2, b2):
    """One-time parameter prep (outside the per-step forward).

    w1: (num_input, num_dim_1)  -- transpose of the PyTorch nn.Linear weight
    w2: (num_dim_1, num_dim_2)
    Returns bf16 weights and (1, d) f32 biases ready for the kernel.
    """
    return (w1.astype(jnp.bfloat16),
            jnp.reshape(b1, (1, -1)).astype(jnp.float32),
            w2.astype(jnp.bfloat16),
            jnp.reshape(b2, (1, -1)).astype(jnp.float32))


_VMEM_LIMIT_BYTES = 56 * 1024 * 1024   # below 64 MiB physical/TC on v7x; well under 128 MiB on v5e/v6e
_VMEM_TILE_BUDGET = 40 * 1024 * 1024   # budget used to derive tile_b (headroom under the limit)


def _pick_tile_b(B, num_input, d1, d2, tile_b):
    # Weights + biases are resident (single-buffered) across the whole grid.
    weight_bytes = 2 * (num_input * d1 + d1 * d2) + 4 * (d1 + d2)

    def tile_bytes(tb):
        # x / out tiles double-buffered (f32) + per-tile f32 h and its bf16 copy.
        return 2 * tb * num_input * 4 + 2 * tb * d2 * 4 + tb * d1 * (4 + 2)

    tb = min(_round_up(tile_b, 8), _round_up(B, 8))
    if B > 8:
        # Keep >= 2 grid steps so dimension_semantics=("parallel",) can feed
        # both v7x TensorCores; harmless on single-TC v5e/v6e.
        tb = min(tb, _round_up((B + 1) // 2, 8))
    tb = max(tb, 8)
    while tb > 8 and weight_bytes + tile_bytes(tb) > _VMEM_TILE_BUDGET:
        tb = max(8, _round_up(tb // 2, 8))
    return tb


def _resident_spec(shape, single_buffer):
    index_map = lambda i: (0,) * len(shape)
    if single_buffer:
        try:
            return pl.BlockSpec(shape, index_map, pipeline_mode=pl.Buffered(1))
        except TypeError:
            pass
    return pl.BlockSpec(shape, index_map)


def _build_forward(B, num_input, d1, d2, tb, single_buffer_weights):
    grid = (pl.cdiv(B, tb),)

    flops = 2 * B * (num_input * d1 + d1 * d2)
    bytes_accessed = (4 * B * num_input                  # x (f32) read
                      + 2 * (num_input * d1 + d1 * d2)   # bf16 weights
                      + 4 * (d1 + d2)                    # f32 biases
                      + 4 * B * d2)                      # f32 output write
    cost = pl.CostEstimate(flops=flops, transcendentals=0,
                           bytes_accessed=bytes_accessed)

    return pl.pallas_call(
        two_layer_encoder_kernel,
        out_shape=jax.ShapeDtypeStruct((B, d2), jnp.float32),
        grid=grid,
        in_specs=[
            # x: streamed over batch; last dim equals the full array dim, so no
            # host-side lane padding (and no extra HBM pass over x).
            pl.BlockSpec((tb, num_input), lambda i: (i, 0)),
            _resident_spec((num_input, d1), single_buffer_weights),  # w1
            _resident_spec((1, d1), single_buffer_weights),          # b1
            _resident_spec((d1, d2), single_buffer_weights),         # w2
            _resident_spec((1, d2), single_buffer_weights),          # b2
        ],
        out_specs=pl.BlockSpec((tb, d2), lambda i: (i, 0)),
        compiler_params=pltpu.CompilerParams(
            dimension_semantics=("parallel",),        # megacore sharding on v7x
            vmem_limit_bytes=_VMEM_LIMIT_BYTES,
        ),
        cost_estimate=cost,
    )


def two_layer_encoder_forward(x, params, *, tile_b=512):
    """Fused TwoLayerEncoder forward.

    x      : (B, num_input) float32
    params : output of prepare_params(w1, b1, w2, b2) with weights stored
             pre-transposed as (in_features, out_features).
    """
    w1, b1, w2, b2 = params
    B, num_input = x.shape
    d1 = w1.shape[1]
    d2 = w2.shape[1]

    # TODO(synk): for very large d1/d2 (weights no longer co-resident in VMEM)
    # add a feature-tiled grid (batch x d2 tiles, h in VMEM scratch under
    # @pl.when(j == 0)); not needed at these sizes.

    tb = _pick_tile_b(B, num_input, d1, d2, tile_b)

    try:
        call = _build_forward(B, num_input, d1, d2, tb, single_buffer_weights=True)
        return call(x, w1, b1, w2, b2)
    except Exception:
        # Fallback if pl.Buffered(1) / pipeline_mode is rejected by this jax build.
        call = _build_forward(B, num_input, d1, d2, tb, single_buffer_weights=False)
        return call(x, w1, b1, w2, b2)


def two_layer_encoder_reference(x, w1, b1, w2, b2):
    h = jnp.maximum(x @ w1 + jnp.reshape(b1, (1, -1)), 0.0)
    return jnp.maximum(h @ w2 + jnp.reshape(b2, (1, -1)), 0.0)


if __name__ == "__main__":
    # Small shapes consistent with TwoLayerEncoder(num_input, num_dim_1, num_dim_2).
    # batch=300 (not a multiple of the tile) exercises the ragged cdiv grid.
    batch = 300
    num_input = 32
    num_dim_1 = 64
    num_dim_2 = 16

    key = jax.random.PRNGKey(0)
    kx, kw1, kb1, kw2, kb2 = jax.random.split(key, 5)

    x = jax.random.normal(kx, (batch, num_input), dtype=jnp.float32)

    # Synthetic parameters, stored pre-transposed as (in, out) for the kernel.
    w1 = jax.random.normal(kw1, (num_input, num_dim_1), dtype=jnp.float32) * 0.1
    b1 = jax.random.normal(kb1, (1, num_dim_1), dtype=jnp.float32) * 0.1
    w2 = jax.random.normal(kw2, (num_dim_1, num_dim_2), dtype=jnp.float32) * 0.1
    b2 = jax.random.normal(kb2, (1, num_dim_2), dtype=jnp.float32) * 0.1

    params = prepare_params(w1, b1, w2, b2)   # one-time bf16 cast / reshape

    out = two_layer_encoder_forward(x, params)
    out = jax.block_until_ready(out)

    ref = two_layer_encoder_reference(x, w1, b1, w2, b2)   # full f32 reference
    assert out.shape == (batch, num_dim_2), out.shape
    # bf16 matmul operands with f32 accumulation -> loosened tolerance.
    assert jnp.allclose(out, ref, atol=5e-2, rtol=5e-2), "mismatch vs reference"

    print("KERNEL_OK")
</pallas_src>

<mosaic_0001>
module attributes {stable_mosaic.version = 11 : i64} {
  func.func @two_layer_encoder_kernel(%arg0: i32, %arg1: memref<152x32xf32, #tpu.memory_space<vmem>>, %arg2: memref<32x64xbf16, #tpu.memory_space<vmem>>, %arg3: memref<1x64xf32, #tpu.memory_space<vmem>>, %arg4: memref<64x16xbf16, #tpu.memory_space<vmem>>, %arg5: memref<1x16xf32, #tpu.memory_space<vmem>>, %arg6: memref<152x16xf32, #tpu.memory_space<vmem>>) attributes {dimension_semantics = [#tpu.dimension_semantics<parallel>], iteration_bounds = array<i64: 2>, scalar_prefetch = 0 : i64, scratch_operands = 0 : i64, tpu.core_type = #tpu.core_type<tc>, window_params = [{transform_indices = @transform_0, window_bounds = array<i64: 152, 32>}, {pipeline_mode = #tpu.pipeline_mode<synchronous>, transform_indices = @transform_1, window_bounds = array<i64: 32, 64>}, {pipeline_mode = #tpu.pipeline_mode<synchronous>, transform_indices = @transform_2, window_bounds = array<i64: 1, 64>}, {pipeline_mode = #tpu.pipeline_mode<synchronous>, transform_indices = @transform_3, window_bounds = array<i64: 64, 16>}, {pipeline_mode = #tpu.pipeline_mode<synchronous>, transform_indices = @transform_4, window_bounds = array<i64: 1, 16>}, {transform_indices = @transform_5, window_bounds = array<i64: 152, 16>}]} {
    %c0 = arith.constant 0 : index
    %c0_0 = arith.constant 0 : index
    %0 = vector.load %arg1[%c0, %c0_0] : memref<152x32xf32, #tpu.memory_space<vmem>>, vector<152x32xf32>
    %1 = arith.truncf %0 : vector<152x32xf32> to vector<152x32xbf16>
    %c0_1 = arith.constant 0 : index
    %c0_2 = arith.constant 0 : index
    %2 = vector.load %arg2[%c0_1, %c0_2] : memref<32x64xbf16, #tpu.memory_space<vmem>>, vector<32x64xbf16>
    %cst = arith.constant dense<0.000000e+00> : vector<152x64xf32>
    %3 = tpu.matmul %1, %2, %cst {dimension_numbers = #tpu.dot_dimension_numbers<[1], [0], [0], [1], [0, 0, 1, 1], [], []>} : vector<152x32xbf16>, vector<32x64xbf16>, vector<152x64xf32> -> vector<152x64xf32>
    %c0_3 = arith.constant 0 : index
    %c0_4 = arith.constant 0 : index
    %4 = vector.load %arg3[%c0_3, %c0_4] : memref<1x64xf32, #tpu.memory_space<vmem>>, vector<1x64xf32>
    %5 = vector.broadcast %4 : vector<1x64xf32> to vector<152x64xf32>
    %6 = arith.addf %3, %5 : vector<152x64xf32>
    %cst_5 = arith.constant 0.000000e+00 : f32
    %7 = vector.broadcast %cst_5 : f32 to vector<152x64xf32>
    %8 = arith.maximumf %6, %7 : vector<152x64xf32>
    %9 = arith.truncf %8 : vector<152x64xf32> to vector<152x64xbf16>
    %c0_6 = arith.constant 0 : index
    %c0_7 = arith.constant 0 : index
    %10 = vector.load %arg4[%c0_6, %c0_7] : memref<64x16xbf16, #tpu.memory_space<vmem>>, vector<64x16xbf16>
    %cst_8 = arith.constant dense<0.000000e+00> : vector<152x16xf32>
    %11 = tpu.matmul %9, %10, %cst_8 {dimension_numbers = #tpu.dot_dimension_numbers<[1], [0], [0], [1], [0, 0, 1, 1], [], []>} : vector<152x64xbf16>, vector<64x16xbf16>, vector<152x16xf32> -> vector<152x16xf32>
    %c0_9 = arith.constant 0 : index
    %c0_10 = arith.constant 0 : index
    %12 = vector.load %arg5[%c0_9, %c0_10] : memref<1x16xf32, #tpu.memory_space<vmem>>, vector<1x16xf32>
    %13 = vector.broadcast %12 : vector<1x16xf32> to vector<152x16xf32>
    %14 = arith.addf %11, %13 : vector<152x16xf32>
    %cst_11 = arith.constant 0.000000e+00 : f32
    %15 = vector.broadcast %cst_11 : f32 to vector<152x16xf32>
    %16 = arith.maximumf %14, %15 : vector<152x16xf32>
    %c0_12 = arith.constant 0 : index
    %c0_13 = arith.constant 0 : index
    %17 = vector.load %arg6[%c0_12, %c0_13] : memref<152x16xf32, #tpu.memory_space<vmem>>, vector<152x16xf32>
    tpu.vector_store %arg6[%c0_12, %c0_13], %16 {strides = array<i32>} : memref<152x16xf32, #tpu.memory_space<vmem>>, vector<152x16xf32>,
    return
  }
  func.func @transform_0(%arg0: i32) -> (i32, i32) {
    %c0_i32 = arith.constant 0 : i32
    %c0_i32_0 = arith.constant 0 : i32
    return %arg0, %c0_i32 : i32, i32
  }
  func.func @transform_1(%arg0: i32) -> (i32, i32) {
    %c0_i32 = arith.constant 0 : i32
    %c0_i32_0 = arith.constant 0 : i32
    %c0_i32_1 = arith.constant 0 : i32
    return %c0_i32, %c0_i32_0 : i32, i32
  }
  func.func @transform_2(%arg0: i32) -> (i32, i32) {
    %c0_i32 = arith.constant 0 : i32
    %c0_i32_0 = arith.constant 0 : i32
    %c0_i32_1 = arith.constant 0 : i32
    return %c0_i32, %c0_i32_0 : i32, i32
  }
  func.func @transform_3(%arg0: i32) -> (i32, i32) {
    %c0_i32 = arith.constant 0 : i32
    %c0_i32_0 = arith.constant 0 : i32
    %c0_i32_1 = arith.constant 0 : i32
    return %c0_i32, %c0_i32_0 : i32, i32
  }
  func.func @transform_4(%arg0: i32) -> (i32, i32) {
    %c0_i32 = arith.constant 0 : i32
    %c0_i32_0 = arith.constant 0 : i32
    %c0_i32_1 = arith.constant 0 : i32
    return %c0_i32, %c0_i32_0 : i32, i32
  }
  func.func @transform_5(%arg0: i32) -> (i32, i32) {
    %c0_i32 = arith.constant 0 : i32
    %c0_i32_0 = arith.constant 0 : i32
    return %arg0, %c0_i32 : i32, i32
  }
}

module attributes {stable_mosaic.version = 11 : i64} {
  func.func @two_layer_encoder_kernel(%arg0: i32, %arg1: memref<152x32xf32, #tpu.memory_space<vmem>>, %arg2: memref<32x64xbf16, #tpu.memory_space<vmem>>, %arg3: memref<1x64xf32, #tpu.memory_space<vmem>>, %arg4: memref<64x16xbf16, #tpu.memory_space<vmem>>, %arg5: memref<1x16xf32, #tpu.memory_space<vmem>>, %arg6: memref<152x16xf32, #tpu.memory_space<vmem>>) attributes {dimension_semantics = [#tpu.dimension_semantics<parallel>], iteration_bounds = array<i64: 2>, scalar_prefetch = 0 : i64, scratch_operands = 0 : i64, tpu.core_type = #tpu.core_type<tc>, window_params = [{transform_indices = @transform_0, window_bounds = array<i64: 152, 32>}, {pipeline_mode = #tpu.pipeline_mode<synchronous>, transform_indices = @transform_1, window_bounds = array<i64: 32, 64>}, {pipeline_mode = #tpu.pipeline_mode<synchronous>, transform_indices = @transform_2, window_bounds = array<i64: 1, 64>}, {pipeline_mode = #tpu.pipeline_mode<synchronous>, transform_indices = @transform_3, window_bounds = array<i64: 64, 16>}, {pipeline_mode = #tpu.pipeline_mode<synchronous>, transform_indices = @transform_4, window_bounds = array<i64: 1, 16>}, {transform_indices = @transform_5, window_bounds = array<i64: 152, 16>}]} {
    %c0 = arith.constant 0 : index
    %c0_0 = arith.constant 0 : index
    %0 = vector.load %arg1[%c0, %c0_0] : memref<152x32xf32, #tpu.memory_space<vmem>>, vector<152x32xf32>
    %1 = arith.truncf %0 : vector<152x32xf32> to vector<152x32xbf16>
    %c0_1 = arith.constant 0 : index
    %c0_2 = arith.constant 0 : index
    %2 = vector.load %arg2[%c0_1, %c0_2] : memref<32x64xbf16, #tpu.memory_space<vmem>>, vector<32x64xbf16>
    %cst = arith.constant dense<0.000000e+00> : vector<152x64xf32>
    %3 = tpu.matmul %1, %2, %cst {dimension_numbers = #tpu.dot_dimension_numbers<[1], [0], [0], [1], [0, 0, 1, 1], [], []>} : vector<152x32xbf16>, vector<32x64xbf16>, vector<152x64xf32> -> vector<152x64xf32>
    %c0_3 = arith.constant 0 : index
    %c0_4 = arith.constant 0 : index
    %4 = vector.load %arg3[%c0_3, %c0_4] : memref<1x64xf32, #tpu.memory_space<vmem>>, vector<1x64xf32>
    %5 = vector.broadcast %4 : vector<1x64xf32> to vector<152x64xf32>
    %6 = arith.addf %3, %5 : vector<152x64xf32>
    %cst_5 = arith.constant 0.000000e+00 : f32
    %7 = vector.broadcast %cst_5 : f32 to vector<152x64xf32>
    %8 = arith.maximumf %6, %7 : vector<152x64xf32>
    %9 = arith.truncf %8 : vector<152x64xf32> to vector<152x64xbf16>
    %c0_6 = arith.constant 0 : index
    %c0_7 = arith.constant 0 : index
    %10 = vector.load %arg4[%c0_6, %c0_7] : memref<64x16xbf16, #tpu.memory_space<vmem>>, vector<64x16xbf16>
    %cst_8 = arith.constant dense<0.000000e+00> : vector<152x16xf32>
    %11 = tpu.matmul %9, %10, %cst_8 {dimension_numbers = #tpu.dot_dimension_numbers<[1], [0], [0], [1], [0, 0, 1, 1], [], []>} : vector<152x64xbf16>, vector<64x16xbf16>, vector<152x16xf32> -> vector<152x16xf32>
    %c0_9 = arith.constant 0 : index
    %c0_10 = arith.constant 0 : index
    %12 = vector.load %arg5[%c0_9, %c0_10] : memref<1x16xf32, #tpu.memory_space<vmem>>, vector<1x16xf32>
    %13 = vector.broadcast %12 : vector<1x16xf32> to vector<152x16xf32>
    %14 = arith.addf %11, %13 : vector<152x16xf32>
    %cst_11 = arith.constant 0.000000e+00 : f32
    %15 = vector.broadcast %cst_11 : f32 to vector<152x16xf32>
    %16 = arith.maximumf %14, %15 : vector<152x16xf32>
    %c0_12 = arith.constant 0 : index
    %c0_13 = arith.constant 0 : index
    %17 = vector.load %arg6[%c0_12, %c0_13] : memref<152x16xf32, #tpu.memory_space<vmem>>, vector<152x16xf32>
    tpu.vector_store %arg6[%c0_12, %c0_13], %16 {strides = array<i32>} : memref<152x16xf32, #tpu.memory_space<vmem>>, vector<152x16xf32>,
    return
  }
  func.func @transform_0(%arg0: i32) -> (i32, i32) {
    %c0_i32 = arith.constant 0 : i32
    %c0_i32_0 = arith.constant 0 : i32
    return %arg0, %c0_i32 : i32, i32
  }
  func.func @transform_1(%arg0: i32) -> (i32, i32) {
    %c0_i32 = arith.constant 0 : i32
    %c0_i32_0 = arith.constant 0 : i32
    %c0_i32_1 = arith.constant 0 : i32
    return %c0_i32, %c0_i32_0 : i32, i32
  }
  func.func @transform_2(%arg0: i32) -> (i32, i32) {
    %c0_i32 = arith.constant 0 : i32
    %c0_i32_0 = arith.constant 0 : i32
    %c0_i32_1 = arith.constant 0 : i32
    return %c0_i32, %c0_i32_0 : i32, i32
  }
  func.func @transform_3(%arg0: i32) -> (i32, i32) {
    %c0_i32 = arith.constant 0 : i32
    %c0_i32_0 = arith.constant 0 : i32
    %c0_i32_1 = arith.constant 0 : i32
    return %c0_i32, %c0_i32_0 : i32, i32
  }
  func.func @transform_4(%arg0: i32) -> (i32, i32) {
    %c0_i32 = arith.constant 0 : i32
    %c0_i32_0 = arith.constant 0 : i32
    %c0_i32_1 = arith.constant 0 : i32
    return %c0_i32, %c0_i32_0 : i32, i32
  }
  func.func @transform_5(%arg0: i32) -> (i32, i32) {
    %c0_i32 = arith.constant 0 : i32
    %c0_i32_0 = arith.constant 0 : i32
    return %arg0, %c0_i32 : i32, i32
  }
}

</mosaic_0001>

<llo_original>
// kernel: tpu_custom_call.1
$region0: #{tpu_custom_call.1}
  #allocation0 [shape = 'u32[]', space=smem, size = 0x4, offset = 0x4, fixed_abs, tag = 'smem constant byte address 0x4 - core index']
  #allocation1 [shape = 'u32[72,128]{1,0:T(1,128)}', space=vmem, size = 0x9000, scoped, tag = 'internal scratch']
  %s0 = inlined_call_operand.vmem [shape: f32[300,32], index: 0, kind: input, shape index: {}]
  %s1 = inlined_call_operand.vmem [shape: bf16[32,64], index: 1, kind: input, shape index: {}]
  %s2 = inlined_call_operand.vmem [shape: f32[1,64], index: 2, kind: input, shape index: {}]
  %s3 = inlined_call_operand.vmem [shape: bf16[64,16], index: 3, kind: input, shape index: {}]
  %s4 = inlined_call_operand.vmem [shape: f32[1,16], index: 4, kind: input, shape index: {}]
  %s5 = inlined_call_operand.vmem [shape: f32[300,16], index: 5, kind: output, shape index: {}]
  %s6 = sld [smem:[#allocation0]]
  $region53: #{tpu_custom_call.1} parent=0
    _
  %s8 = ssub.s32 1, %s6
  %s9 = scalar_select 0, %s8, %s6
  loop: start=0, step=1, limit=4
  $region2: #{tpu_custom_call.1} parent=0 // loop_pre_header
    _
  $region3: #{tpu_custom_call.1} parent=0 // loop_header
    %s11 = sphi 0, %s15
    %p12 = scmp.ge.s32.totalorder %s11, 4
    %s21 = sphi 0, %s23
    %s24 = sphi 0, %s21
    %s25 = sphi 0, %s24
    %s41 = sphi 0, %s25
    %s45 = sphi 0, %s45
    %s47 = sphi 0, %s45
    %s48 = sphi 0, %s47
    %s62 = sphi 0, %s48
    %s66 = sphi 0, %s66
    %s68 = sphi 0, %s66
    %s69 = sphi 0, %s68
    %s83 = sphi 0, %s69
    %s87 = sphi 0, %s87
    %s89 = sphi 0, %s87
    %s90 = sphi 0, %s89
    %s104 = sphi 0, %s90
    %s108 = sphi 0, %s108
    %s110 = sphi 0, %s108
    %s111 = sphi 0, %s110
    %s125 = sphi 0, %s111
    %s131 = sphi 0, %s133
    %s134 = sphi 0, %s131
    %s135 = sphi 0, %s134
    %s151 = sphi 0, %s135
  $region4: #{tpu_custom_call.1} parent=0 // loop_header_branch
    %14 = sbr.rel (%p12) target = $region8
  $region5: #{tpu_custom_call.1} parent=0 // loop_body
    %s16 = ssub.s32 %s11, 1
    %s17 = ssub.s32 %s11, 2
    %s18 = sadd.s32 %s11, 1
    %s19 = ssub.s32 %s11, %s18
    %p20 = scmp.eq.s32.totalorder %s19, 0
    %s22 = sadd.s32 %s21, 1
    %s23 = scalar_select %p20, %s21, %s22
    %p26 = pneg %p20
    %p27 = scmp.eq.s32.totalorder %s11, 1
    %p28 = por %p26, %p27
    %p29 = scmp.ne.s32.totalorder %s21, %s24
    %p30 = scmp.eq.s32.totalorder %s11, 0
    %p31 = por %p29, %p30
    %p32 = scmp.ne.s32.totalorder %s21, %s24
    %p33 = scmp.eq.s32.totalorder %s16, 1
    %p34 = por %p32, %p33
    %p35 = scmp.ne.s32.totalorder %s24, %s25
    %p36 = scmp.eq.s32.totalorder %s16, 0
    %p37 = por %p35, %p36
    %p38 = scmp.ne.s32.totalorder %s24, %s25
    %p39 = scmp.eq.s32.totalorder %s17, 1
    %p40 = por %p38, %p39
    %p42 = scmp.ne.s32.totalorder %s25, %s41
    %p43 = scmp.eq.s32.totalorder %s17, 0
    %p44 = por %p42, %p43
    %s46 = sadd.s32 %s45, 1
    %p49 = scmp.eq.s32.totalorder %s11, 1
    %p50 = scmp.ne.s32.totalorder %s45, %s47
    %p51 = scmp.eq.s32.totalorder %s11, 0
    %p52 = por %p50, %p51
    %p53 = scmp.ne.s32.totalorder %s45, %s47
    %p54 = scmp.eq.s32.totalorder %s16, 1
    %p55 = por %p53, %p54
    %p56 = scmp.ne.s32.totalorder %s47, %s48
    %p57 = scmp.eq.s32.totalorder %s16, 0
    %p58 = por %p56, %p57
    %p59 = scmp.ne.s32.totalorder %s47, %s48
    %p60 = scmp.eq.s32.totalorder %s17, 1
    %p61 = por %p59, %p60
    %p63 = scmp.ne.s32.totalorder %s48, %s62
    %p64 = scmp.eq.s32.totalorder %s17, 0
    %p65 = por %p63, %p64
    %s67 = sadd.s32 %s66, 1
    %p70 = scmp.eq.s32.totalorder %s11, 1
    %p71 = scmp.ne.s32.totalorder %s66, %s68
    %p72 = scmp.eq.s32.totalorder %s11, 0
    %p73 = por %p71, %p72
    %p74 = scmp.ne.s32.totalorder %s66, %s68
    %p75 = scmp.eq.s32.totalorder %s16, 1
    %p76 = por %p74, %p75
    %p77 = scmp.ne.s32.totalorder %s68, %s69
    %p78 = scmp.eq.s32.totalorder %s16, 0
    %p79 = por %p77, %p78
    %p80 = scmp.ne.s32.totalorder %s68, %s69
    %p81 = scmp.eq.s32.totalorder %s17, 1
    %p82 = por %p80, %p81
    %p84 = scmp.ne.s32.totalorder %s69, %s83
    %p85 = scmp.eq.s32.totalorder %s17, 0
    %p86 = por %p84, %p85
    %s88 = sadd.s32 %s87, 1
    %p91 = scmp.eq.s32.totalorder %s11, 1
    %p92 = scmp.ne.s32.totalorder %s87, %s89
    %p93 = scmp.eq.s32.totalorder %s11, 0
    %p94 = por %p92, %p93
    %p95 = scmp.ne.s32.totalorder %s87, %s89
    %p96 = scmp.eq.s32.totalorder %s16, 1
    %p97 = por %p95, %p96
    %p98 = scmp.ne.s32.totalorder %s89, %s90
    %p99 = scmp.eq.s32.totalorder %s16, 0
    %p100 = por %p98, %p99
    %p101 = scmp.ne.s32.totalorder %s89, %s90
    %p102 = scmp.eq.s32.totalorder %s17, 1
    %p103 = por %p101, %p102
    %p105 = scmp.ne.s32.totalorder %s90, %s104
    %p106 = scmp.eq.s32.totalorder %s17, 0
    %p107 = por %p105, %p106
    %s109 = sadd.s32 %s108, 1
    %p112 = scmp.eq.s32.totalorder %s11, 1
    %p113 = scmp.ne.s32.totalorder %s108, %s110
    %p114 = scmp.eq.s32.totalorder %s11, 0
    %p115 = por %p113, %p114
    %p116 = scmp.ne.s32.totalorder %s108, %s110
    %p117 = scmp.eq.s32.totalorder %s16, 1
    %p118 = por %p116, %p117
    %p119 = scmp.ne.s32.totalorder %s110, %s111
    %p120 = scmp.eq.s32.totalorder %s16, 0
    %p121 = por %p119, %p120
    %p122 = scmp.ne.s32.totalorder %s110, %s111
    %p123 = scmp.eq.s32.totalorder %s17, 1
    %p124 = por %p122, %p123
    %p126 = scmp.ne.s32.totalorder %s111, %s125
    %p127 = scmp.eq.s32.totalorder %s17, 0
    %p128 = por %p126, %p127
    %s129 = ssub.s32 %s11, %s18
    %p130 = scmp.eq.s32.totalorder %s129, 0
    %s132 = sadd.s32 %s131, 1
    %s133 = scalar_select %p130, %s131, %s132
    %p136 = pneg %p130
    %p137 = scmp.eq.s32.totalorder %s11, 1
    %p138 = por %p136, %p137
    %p139 = scmp.ne.s32.totalorder %s131, %s134
    %p140 = scmp.eq.s32.totalorder %s11, 0
    %p141 = por %p139, %p140
    %p142 = scmp.ne.s32.totalorder %s131, %s134
    %p143 = scmp.eq.s32.totalorder %s16, 1
    %p144 = por %p142, %p143
    %p145 = scmp.ne.s32.totalorder %s134, %s135
    %p146 = scmp.eq.s32.totalorder %s16, 0
    %p147 = por %p145, %p146
    %p148 = scmp.ne.s32.totalorder %s134, %s135
    %p149 = scmp.eq.s32.totalorder %s17, 1
    %p150 = por %p148, %p149
    %p152 = scmp.ne.s32.totalorder %s135, %s151
    %p153 = scmp.eq.s32.totalorder %s17, 0
    %p154 = por %p152, %p153
    %p155 = scmp.le.s32.totalorder 1, %s11
    %p156 = scmp.lt.s32.totalorder %s11, 3
    %p157 = pnand %p155, %p156
    %p158 = pneg %p157
    // Predicated region
    $region9: #{tpu_custom_call.1} parent=5 // pred_check
      _
    $region10: #{tpu_custom_call.1} parent=5 // pred_check_branch
      %160 = sbr.rel (%p157) target = $region12
    $region11: #{tpu_custom_call.1} parent=5 // pred_region
      %s161 = ssub.s32 %s11, 1
      // Predicated region
      $region13: #{tpu_custom_call.1} parent=11 // pred_check
        %p162 = pneg %p58
      $region14: #{tpu_custom_call.1} parent=11 // pred_check_branch
        %164 = sbr.rel (%p162) target = $region16
      $region15: #{tpu_custom_call.1} parent=11 // pred_region
        _
      $region16: #{tpu_custom_call.1} parent=11 // pred_fallthru
        _
      // Predicated region
      $region17: #{tpu_custom_call.1} parent=11 // pred_check
        %p165 = pneg %p79
      $region18: #{tpu_custom_call.1} parent=11 // pred_check_branch
        %167 = sbr.rel (%p165) target = $region20
      $region19: #{tpu_custom_call.1} parent=11 // pred_region
        _
      $region20: #{tpu_custom_call.1} parent=11 // pred_fallthru
        _
      // Predicated region
      $region21: #{tpu_custom_call.1} parent=11 // pred_check
        %p168 = pneg %p100
      $region22: #{tpu_custom_call.1} parent=11 // pred_check_branch
        %170 = sbr.rel (%p168) target = $region24
      $region23: #{tpu_custom_call.1} parent=11 // pred_region
        _
      $region24: #{tpu_custom_call.1} parent=11 // pred_fallthru
        _
      // Predicated region
      $region25: #{tpu_custom_call.1} parent=11 // pred_check
        %p171 = pneg %p121
      $region26: #{tpu_custom_call.1} parent=11 // pred_check_branch
        %173 = sbr.rel (%p171) target = $region28
      $region27: #{tpu_custom_call.1} parent=11 // pred_region
        _
      $region28: #{tpu_custom_call.1} parent=11 // pred_fallthru
        _
    $region12: #{tpu_custom_call.1} parent=5 // pred_fallthru
      _
    %p174 = scmp.lt.s32.totalorder %s11, 2
    // Predicated region
    $region29: #{tpu_custom_call.1} parent=5 // pred_check
      %p175 = pneg %p174
    $region30: #{tpu_custom_call.1} parent=5 // pred_check_branch
      %177 = sbr.rel (%p175) target = $region32
    $region31: #{tpu_custom_call.1} parent=5 // pred_region
      // Predicated region
      $region33: #{tpu_custom_call.1} parent=31 // pred_check
        %p178 = pneg %p31
      $region34: #{tpu_custom_call.1} parent=31 // pred_check_branch
        %180 = sbr.rel (%p178) target = $region36
      $region35: #{tpu_custom_call.1} parent=31 // pred_region
        %s181 = smul.u32 19, %s11
        %p182 = scmp.lt.s32.totalorder %s181, 37
        %s183 = scalar_select %p182, %s181, 37
        %s184 = smul.addr %s183, 8
        %s185 = scalar_lea.vmem %s0, %s184
        %s186 = smul.u32 19, %s11
      $region36: #{tpu_custom_call.1} parent=31 // pred_fallthru
        _
    $region32: #{tpu_custom_call.1} parent=5 // pred_fallthru
      _
    %p187 = scmp.le.s32.totalorder 1, %s11
    %p188 = scmp.lt.s32.totalorder %s11, 3
    %p189 = pnand %p187, %p188
    %p190 = pneg %p189
    // Predicated region
    $region37: #{tpu_custom_call.1} parent=5 // pred_check
      _
    $region38: #{tpu_custom_call.1} parent=5 // pred_check_branch
      %192 = sbr.rel (%p189) target = $region40
    $region39: #{tpu_custom_call.1} parent=5 // pred_region
      %s193 = ssub.s32 %s11, 1
      %s194 = smul.u32 19, %s16
      %p195 = scmp.lt.s32.totalorder %s194, 37
      %s196 = scalar_select %p195, %s194, 37
      %s197 = smul.addr %s196, 8
      %s198 = scalar_lea.vmem %s0, %s197
      %p199 = pneg %p37
      %p200 = pneg %p34
      %p201 = pneg %p58
      %p202 = pneg %p55
      %p203 = pneg %p79
      %p204 = pneg %p76
      %p205 = pneg %p100
      %p206 = pneg %p97
      %p207 = pneg %p121
      %p208 = pneg %p118
      %p209 = pneg %p147
      %p210 = pneg %p144
      %s211 = smul.u32 19, %s16
      %p212 = scmp.lt.s32.totalorder %s211, 37
      %s213 = scalar_select %p212, %s211, 37
      %s214 = smul.addr %s213, 8
      %s215 = scalar_lea.vmem %s5, %s214
      %s216 = smul.u32 19, %s16
      %p217 = scmp.lt.s32.totalorder %s216, 37
      %s218 = scalar_select %p217, %s216, 37
      %s219 = smul.addr %s218, 8
      %s220 = scalar_lea.vmem %s0, %s219
      %s221 = smul.u32 19, %s16
      %s222 = smul.u32 19, %s16
      %p223 = scmp.lt.s32.totalorder %s222, 37
      %s224 = scalar_select %p223, %s222, 37
      %s225 = smul.addr %s224, 8
      %s226 = scalar_lea.vmem %s5, %s225
      %s227 = smul.u32 19, %s16
      %v229 = vld [vmem:[%s220] sm:$0xff]
      %v230 = vld [vmem:[%s220 + $0x8] sm:$0xff]
      %v231 = vld [vmem:[%s220 + $0x10] sm:$0xff]
      %v232 = vld [vmem:[%s220 + $0x18] sm:$0xff]
      %v233 = vld [vmem:[%s220 + $0x20] sm:$0xff]
      %v234 = vld [vmem:[%s220 + $0x28] sm:$0xff]
      %v235 = vld [vmem:[%s220 + $0x30] sm:$0xff]
      %v236 = vld [vmem:[%s220 + $0x38] sm:$0xff]
      %v237 = vld [vmem:[%s220 + $0x40] sm:$0xff]
      %v238 = vld [vmem:[%s220 + $0x48] sm:$0xff]
      %v239 = vld [vmem:[%s220 + $0x50] sm:$0xff]
      %v240 = vld [vmem:[%s220 + $0x58] sm:$0xff]
      %v241 = vld [vmem:[%s220 + $0x60] sm:$0xff]
      %v242 = vld [vmem:[%s220 + $0x68] sm:$0xff]
      %v243 = vld [vmem:[%s220 + $0x70] sm:$0xff]
      %v244 = vld [vmem:[%s220 + $0x78] sm:$0xff]
      %v245 = vld [vmem:[%s220 + $0x80] sm:$0xff]
      %v246 = vld [vmem:[%s220 + $0x88] sm:$0xff]
      %v247 = vld [vmem:[%s220 + $0x90] sm:$0xff]
      %v248 = vpack.c.bf16 %v230, %v229
      %v249 = vpack.c.bf16 %v232, %v231
      %v250 = vpack.c.bf16 %v234, %v233
      %v251 = vpack.c.bf16 %v236, %v235
      %v252 = vpack.c.bf16 %v238, %v237
      %v253 = vpack.c.bf16 %v240, %v239
      %v254 = vpack.c.bf16 %v242, %v241
      %v255 = vpack.c.bf16 %v244, %v243
      %v256 = vpack.c.bf16 %v246, %v245
      %v257 = vpack.c.bf16 %v247, %v247
      %v258 = vld [vmem:[%s1] sm:$0xf]
      %v259 = vld [vmem:[%s1 + $0x4] sm:$0xf]
      %v260 = vld [vmem:[%s1 + $0x8] sm:$0xf]
      %v261 = vld [vmem:[%s1 + $0xc] sm:$0xf]
      %v262 = vld [vmem:[%s2] sm:$0x1]
      %v264 = vperm.slane %v262, 0
      %v270 = vunpack.c.l.b16 %v258
      %v271 = vunpack.c.l.b16 %v259
      %v272 = vunpack.c.l.b16 %v260
      %v273 = vunpack.c.l.b16 %v261
      %v274 = vpack.c.b16 %v271, %v270
      %v275 = vpack.c.b16 %v273, %v272
      %vm278 = vcmask 261120
      %v280 = vsel %vm278, %v248, 0
      %v283 = vsel %vm278, %v249, 0
      %v286 = vsel %vm278, %v250, 0
      %v289 = vsel %vm278, %v251, 0
      %v292 = vsel %vm278, %v252, 0
      %v295 = vsel %vm278, %v253, 0
      %v298 = vsel %vm278, %v254, 0
      %v301 = vsel %vm278, %v255, 0
      %v304 = vsel %vm278, %v256, 0
      %v307 = vsel %vm278, %v257, 0
      %309 = vmatpush.bf16.msra.mxu0 0
      %310 = vmatpush.bf16.msra.mxu0 0
      %311 = vmatpush.bf16.msra.mxu0 0
      %312 = vmatpush.bf16.msra.mxu0 0
      %313 = vmatpush.bf16.msra.mxu0 0
      %314 = vmatpush.bf16.msra.mxu0 0
      %315 = vmatpush.bf16.msra.mxu0 %v275
      %316 = vmatpush.bf16.msra.mxu0 %v274
      %317 = vmatmul.bf16.gmra.mxu0 %v280
      %v318 = vpop.f32.mrf.mxu0
      %v319 = vadd.f32 %v264, %v318
      %v320 = vpop.f32.mrf.mxu0
      %v321 = vadd.f32 %v264, %v320
      %322 = vmatmul.bf16.gmra.mxu0 %v283
      %v323 = vpop.f32.mrf.mxu0
      %v324 = vadd.f32 %v264, %v323
      %v325 = vpop.f32.mrf.mxu0
      %v326 = vadd.f32 %v264, %v325
      %327 = vmatmul.bf16.gmra.mxu0 %v286
      %v328 = vpop.f32.mrf.mxu0
      %v329 = vadd.f32 %v264, %v328
      %v330 = vpop.f32.mrf.mxu0
      %v331 = vadd.f32 %v264, %v330
      %332 = vmatmul.bf16.gmra.mxu0 %v289
      %v333 = vpop.f32.mrf.mxu0
      %v334 = vadd.f32 %v264, %v333
      %v335 = vpop.f32.mrf.mxu0
      %v336 = vadd.f32 %v264, %v335
      %337 = vmatmul.bf16.gmra.mxu0 %v292
      %v338 = vpop.f32.mrf.mxu0
      %v339 = vadd.f32 %v264, %v338
      %v340 = vpop.f32.mrf.mxu0
      %v341 = vadd.f32 %v264, %v340
      %342 = vmatmul.bf16.gmra.mxu0 %v295
      %v343 = vpop.f32.mrf.mxu0
      %v344 = vadd.f32 %v264, %v343
      %v345 = vpop.f32.mrf.mxu0
      %v346 = vadd.f32 %v264, %v345
      %347 = vmatmul.bf16.gmra.mxu0 %v298
      %v348 = vpop.f32.mrf.mxu0
      %v349 = vadd.f32 %v264, %v348
      %v350 = vpop.f32.mrf.mxu0
      %v351 = vadd.f32 %v264, %v350
      %352 = vmatmul.bf16.gmra.mxu0 %v301
      %v353 = vpop.f32.mrf.mxu0
      %v354 = vadd.f32 %v264, %v353
      %v355 = vpop.f32.mrf.mxu0
      %v356 = vadd.f32 %v264, %v355
      %357 = vmatmul.bf16.gmra.mxu0 %v304
      %v358 = vpop.f32.mrf.mxu0
      %v359 = vadd.f32 %v264, %v358
      %v360 = vpop.f32.mrf.mxu0
      %v361 = vadd.f32 %v264, %v360
      %362 = vmatmul.bf16.gmra.mxu0 %v307
      %v363 = vpop.f32.mrf.mxu0
      %v364 = vadd.f32 %v264, %v363
      %v365 = vpop.f32.mrf.mxu0
      %366 = vdwg.mxu0
      %v367 = vmax.f32 %v319, 0.0
      %v368 = vmax.f32 %v321, 0.0
      %v369 = vmax.f32 %v324, 0.0
      %v370 = vmax.f32 %v326, 0.0
      %v371 = vmax.f32 %v329, 0.0
      %v372 = vmax.f32 %v331, 0.0
      %v373 = vmax.f32 %v334, 0.0
      %v374 = vmax.f32 %v336, 0.0
      %v375 = vmax.f32 %v339, 0.0
      %v376 = vmax.f32 %v341, 0.0
      %v377 = vmax.f32 %v344, 0.0
      %v378 = vmax.f32 %v346, 0.0
      %v379 = vmax.f32 %v349, 0.0
      %v380 = vmax.f32 %v351, 0.0
      %v381 = vmax.f32 %v354, 0.0
      %v382 = vmax.f32 %v356, 0.0
      %v383 = vmax.f32 %v359, 0.0
      %v384 = vmax.f32 %v361, 0.0
      %v385 = vmax.f32 %v364, 0.0
      %v386 = vpack.c.bf16 %v368, %v367
      %v387 = vpack.c.bf16 %v370, %v369
      %v388 = vpack.c.bf16 %v372, %v371
      %v389 = vpack.c.bf16 %v374, %v373
      %v390 = vpack.c.bf16 %v376, %v375
      %v391 = vpack.c.bf16 %v378, %v377
      %v392 = vpack.c.bf16 %v380, %v379
      %v393 = vpack.c.bf16 %v382, %v381
      %v394 = vpack.c.bf16 %v384, %v383
      %v395 = vpack.c.bf16 %v385, %v385
      %v396 = vld [vmem:[%s3] sm:$0xf]
      %v397 = vld [vmem:[%s3 + $0x4] sm:$0xf]
      %v398 = vld [vmem:[%s3 + $0x8] sm:$0xf]
      %v399 = vld [vmem:[%s3 + $0xc] sm:$0xf]
      %v400 = vld [vmem:[%s3 + $0x10] sm:$0xf]
      %v401 = vld [vmem:[%s3 + $0x14] sm:$0xf]
      %v402 = vld [vmem:[%s3 + $0x18] sm:$0xf]
      %v403 = vld [vmem:[%s3 + $0x1c] sm:$0xf]
      %v404 = vld [vmem:[%s4] sm:$0x1]
      %v406 = vperm.slane %v404, 0
      %v416 = vunpack.c.l.b16 %v396
      %v417 = vunpack.c.l.b16 %v397
      %v418 = vunpack.c.l.b16 %v398
      %v419 = vunpack.c.l.b16 %v399
      %v420 = vunpack.c.l.b16 %v400
      %v421 = vunpack.c.l.b16 %v401
      %v422 = vunpack.c.l.b16 %v402
      %v423 = vunpack.c.l.b16 %v403
      %v424 = vpack.c.b16 %v417, %v416
      %v425 = vpack.c.b16 %v419, %v418
      %v426 = vpack.c.b16 %v421, %v420
      %v427 = vpack.c.b16 %v423, %v422
      %vm432 = vcmask 523264
      %v434 = vsel %vm432, %v386, 0
      %v437 = vsel %vm432, %v387, 0
      %v440 = vsel %vm432, %v388, 0
      %v443 = vsel %vm432, %v389, 0
      %v446 = vsel %vm432, %v390, 0
      %v449 = vsel %vm432, %v391, 0
      %v452 = vsel %vm432, %v392, 0
      %v455 = vsel %vm432, %v393, 0
      %v458 = vsel %vm432, %v394, 0
      %v461 = vsel %vm432, %v395, 0
      %463 = vmatpush.bf16.msra.mxu0 0
      %464 = vmatpush.bf16.msra.mxu0 0
      %465 = vmatpush.bf16.msra.mxu0 0
      %466 = vmatpush.bf16.msra.mxu0 0
      %467 = vmatpush.bf16.msra.mxu0 %v427
      %468 = vmatpush.bf16.msra.mxu0 %v426
      %469 = vmatpush.bf16.msra.mxu0 %v425
      %470 = vmatpush.bf16.msra.mxu0 %v424
      %471 = vmatmul.bf16.gmra.mxu0 %v434
      %v472 = vpop.f32.mrf.mxu0
      %v473 = vadd.f32 %v406, %v472
      %v474 = vpop.f32.mrf.mxu0
      %v475 = vadd.f32 %v406, %v474
      %476 = vmatmul.bf16.gmra.mxu0 %v437
      %v477 = vpop.f32.mrf.mxu0
      %v478 = vadd.f32 %v406, %v477
      %v479 = vpop.f32.mrf.mxu0
      %v480 = vadd.f32 %v406, %v479
      %481 = vmatmul.bf16.gmra.mxu0 %v440
      %v482 = vpop.f32.mrf.mxu0
      %v483 = vadd.f32 %v406, %v482
      %v484 = vpop.f32.mrf.mxu0
      %v485 = vadd.f32 %v406, %v484
      %486 = vmatmul.bf16.gmra.mxu0 %v443
      %v487 = vpop.f32.mrf.mxu0
      %v488 = vadd.f32 %v406, %v487
      %v489 = vpop.f32.mrf.mxu0
      %v490 = vadd.f32 %v406, %v489
      %491 = vmatmul.bf16.gmra.mxu0 %v446
      %v492 = vpop.f32.mrf.mxu0
      %v493 = vadd.f32 %v406, %v492
      %v494 = vpop.f32.mrf.mxu0
      %v495 = vadd.f32 %v406, %v494
      %496 = vmatmul.bf16.gmra.mxu0 %v449
      %v497 = vpop.f32.mrf.mxu0
      %v498 = vadd.f32 %v406, %v497
      %v499 = vpop.f32.mrf.mxu0
      %v500 = vadd.f32 %v406, %v499
      %501 = vmatmul.bf16.gmra.mxu0 %v452
      %v502 = vpop.f32.mrf.mxu0
      %v503 = vadd.f32 %v406, %v502
      %v504 = vpop.f32.mrf.mxu0
      %v505 = vadd.f32 %v406, %v504
      %506 = vmatmul.bf16.gmra.mxu0 %v455
      %v507 = vpop.f32.mrf.mxu0
      %v508 = vadd.f32 %v406, %v507
      %v509 = vpop.f32.mrf.mxu0
      %v510 = vadd.f32 %v406, %v509
      %511 = vmatmul.bf16.gmra.mxu0 %v458
      %v512 = vpop.f32.mrf.mxu0
      %v513 = vadd.f32 %v406, %v512
      %v514 = vpop.f32.mrf.mxu0
      %v515 = vadd.f32 %v406, %v514
      %516 = vmatmul.bf16.gmra.mxu0 %v461
      %v517 = vpop.f32.mrf.mxu0
      %v518 = vadd.f32 %v406, %v517
      %v519 = vpop.f32.mrf.mxu0
      %520 = vdwg.mxu0
      %v521 = vmax.f32 %v473, 0.0
      %v522 = vmax.f32 %v475, 0.0
      %v523 = vmax.f32 %v478, 0.0
      %v524 = vmax.f32 %v480, 0.0
      %v525 = vmax.f32 %v483, 0.0
      %v526 = vmax.f32 %v485, 0.0
      %v527 = vmax.f32 %v488, 0.0
      %v528 = vmax.f32 %v490, 0.0
      %v529 = vmax.f32 %v493, 0.0
      %v530 = vmax.f32 %v495, 0.0
      %v531 = vmax.f32 %v498, 0.0
      %v532 = vmax.f32 %v500, 0.0
      %v533 = vmax.f32 %v503, 0.0
      %v534 = vmax.f32 %v505, 0.0
      %v535 = vmax.f32 %v508, 0.0
      %v536 = vmax.f32 %v510, 0.0
      %v537 = vmax.f32 %v513, 0.0
      %v538 = vmax.f32 %v515, 0.0
      %v539 = vmax.f32 %v518, 0.0
      %vm540 = vcmask 130048
      %541 = vst.msk [vmem:[%s226] sm:$0xff] %vm540, %v521
      %542 = vst.msk [vmem:[%s226 + $0x8] sm:$0xff] %vm540, %v522
      %543 = vst.msk [vmem:[%s226 + $0x10] sm:$0xff] %vm540, %v523
      %544 = vst.msk [vmem:[%s226 + $0x18] sm:$0xff] %vm540, %v524
      %545 = vst.msk [vmem:[%s226 + $0x20] sm:$0xff] %vm540, %v525
      %546 = vst.msk [vmem:[%s226 + $0x28] sm:$0xff] %vm540, %v526
      %547 = vst.msk [vmem:[%s226 + $0x30] sm:$0xff] %vm540, %v527
      %548 = vst.msk [vmem:[%s226 + $0x38] sm:$0xff] %vm540, %v528
      %549 = vst.msk [vmem:[%s226 + $0x40] sm:$0xff] %vm540, %v529
      %550 = vst.msk [vmem:[%s226 + $0x48] sm:$0xff] %vm540, %v530
      %551 = vst.msk [vmem:[%s226 + $0x50] sm:$0xff] %vm540, %v531
      %552 = vst.msk [vmem:[%s226 + $0x58] sm:$0xff] %vm540, %v532
      %553 = vst.msk [vmem:[%s226 + $0x60] sm:$0xff] %vm540, %v533
      %554 = vst.msk [vmem:[%s226 + $0x68] sm:$0xff] %vm540, %v534
      %555 = vst.msk [vmem:[%s226 + $0x70] sm:$0xff] %vm540, %v535
      %556 = vst.msk [vmem:[%s226 + $0x78] sm:$0xff] %vm540, %v536
      %557 = vst.msk [vmem:[%s226 + $0x80] sm:$0xff] %vm540, %v537
      %558 = vst.msk [vmem:[%s226 + $0x88] sm:$0xff] %vm540, %v538
      %559 = vst.msk [vmem:[%s226 + $0x90] sm:$0xff] %vm540, %v539
      %s560 = smul.u32 19, %s16
      %p561 = scmp.lt.s32.totalorder %s560, 37
      %s562 = scalar_select %p561, %s560, 37
      %s563 = smul.addr %s562, 8
      %s564 = scalar_lea.vmem %s5, %s563
      // Predicated region
      $region41: #{tpu_custom_call.1} parent=39 // pred_check
        %p565 = pneg %p144
      $region42: #{tpu_custom_call.1} parent=39 // pred_check_branch
        %567 = sbr.rel (%p565) target = $region44
      $region43: #{tpu_custom_call.1} parent=39 // pred_region
        %s568 = smul.u32 19, %s16
      $region44: #{tpu_custom_call.1} parent=39 // pred_fallthru
        _
    $region40: #{tpu_custom_call.1} parent=5 // pred_fallthru
      _
    %p569 = scmp.le.s32.totalorder 2, %s11
    // Predicated region
    $region45: #{tpu_custom_call.1} parent=5 // pred_check
      %p570 = pneg %p569
    $region46: #{tpu_custom_call.1} parent=5 // pred_check_branch
      %572 = sbr.rel (%p570) target = $region48
    $region47: #{tpu_custom_call.1} parent=5 // pred_region
      %s573 = ssub.s32 %s11, 2
      // Predicated region
      $region49: #{tpu_custom_call.1} parent=47 // pred_check
        %p574 = pneg %p150
      $region50: #{tpu_custom_call.1} parent=47 // pred_check_branch
        %576 = sbr.rel (%p574) target = $region52
      $region51: #{tpu_custom_call.1} parent=47 // pred_region
        %s577 = smul.u32 19, %s17
        %p578 = scmp.lt.s32.totalorder %s577, 37
        %s579 = scalar_select %p578, %s577, 37
        %s580 = smul.addr %s579, 8
        %s581 = scalar_lea.vmem %s5, %s580
      $region52: #{tpu_custom_call.1} parent=47 // pred_fallthru
        _
    $region48: #{tpu_custom_call.1} parent=5 // pred_fallthru
      _
  $region6: #{tpu_custom_call.1} parent=0 // loop_footer
    %s15 = sadd.s32 1, %s11
  $region7: #{tpu_custom_call.1} parent=0 // loop_footer_branch
    %10 = sbr.rel target = $region3
  $region8: #{tpu_custom_call.1} parent=0 // loop_exit
    _

// kernel: tpu_custom_call.1
$region0: #{tpu_custom_call.1}
  #allocation0 [shape = 'u32[]', space=smem, size = 0x4, offset = 0x4, fixed_abs, tag = 'smem constant byte address 0x4 - core index']
  #allocation1 [shape = 'u32[72,128]{1,0:T(1,128)}', space=vmem, size = 0x9000, scoped, tag = 'internal scratch']
  %s0 = inlined_call_operand.vmem [shape: f32[300,32], index: 0, kind: input, shape index: {}]
  %s1 = inlined_call_operand.vmem [shape: bf16[32,64], index: 1, kind: input, shape index: {}]
  %s2 = inlined_call_operand.vmem [shape: f32[1,64], index: 2, kind: input, shape index: {}]
  %s3 = inlined_call_operand.vmem [shape: bf16[64,16], index: 3, kind: input, shape index: {}]
  %s4 = inlined_call_operand.vmem [shape: f32[1,16], index: 4, kind: input, shape index: {}]
  %s5 = inlined_call_operand.vmem [shape: f32[300,16], index: 5, kind: output, shape index: {}]
  %s6 = sld [smem:[#allocation0]]
  $region53: #{tpu_custom_call.1} parent=0
    _
  %s8 = ssub.s32 1, %s6
  %s9 = scalar_select 0, %s8, %s6
  loop: start=0, step=1, limit=4
  $region2: #{tpu_custom_call.1} parent=0 // loop_pre_header
    _
  $region3: #{tpu_custom_call.1} parent=0 // loop_header
    %s11 = sphi 0, %s15
    %p12 = scmp.ge.s32.totalorder %s11, 4
    %s21 = sphi 0, %s23
    %s24 = sphi 0, %s21
    %s25 = sphi 0, %s24
    %s41 = sphi 0, %s25
    %s45 = sphi 0, %s45
    %s47 = sphi 0, %s45
    %s48 = sphi 0, %s47
    %s62 = sphi 0, %s48
    %s66 = sphi 0, %s66
    %s68 = sphi 0, %s66
    %s69 = sphi 0, %s68
    %s83 = sphi 0, %s69
    %s87 = sphi 0, %s87
    %s89 = sphi 0, %s87
    %s90 = sphi 0, %s89
    %s104 = sphi 0, %s90
    %s108 = sphi 0, %s108
    %s110 = sphi 0, %s108
    %s111 = sphi 0, %s110
    %s125 = sphi 0, %s111
    %s131 = sphi 0, %s133
    %s134 = sphi 0, %s131
    %s135 = sphi 0, %s134
    %s151 = sphi 0, %s135
  $region4: #{tpu_custom_call.1} parent=0 // loop_header_branch
    %14 = sbr.rel (%p12) target = $region8
  $region5: #{tpu_custom_call.1} parent=0 // loop_body
    %s16 = ssub.s32 %s11, 1
    %s17 = ssub.s32 %s11, 2
    %s18 = sadd.s32 %s11, 1
    %s19 = ssub.s32 %s11, %s18
    %p20 = scmp.eq.s32.totalorder %s19, 0
    %s22 = sadd.s32 %s21, 1
    %s23 = scalar_select %p20, %s21, %s22
    %p26 = pneg %p20
    %p27 = scmp.eq.s32.totalorder %s11, 1
    %p28 = por %p26, %p27
    %p29 = scmp.ne.s32.totalorder %s21, %s24
    %p30 = scmp.eq.s32.totalorder %s11, 0
    %p31 = por %p29, %p30
    %p32 = scmp.ne.s32.totalorder %s21, %s24
    %p33 = scmp.eq.s32.totalorder %s16, 1
    %p34 = por %p32, %p33
    %p35 = scmp.ne.s32.totalorder %s24, %s25
    %p36 = scmp.eq.s32.totalorder %s16, 0
    %p37 = por %p35, %p36
    %p38 = scmp.ne.s32.totalorder %s24, %s25
    %p39 = scmp.eq.s32.totalorder %s17, 1
    %p40 = por %p38, %p39
    %p42 = scmp.ne.s32.totalorder %s25, %s41
    %p43 = scmp.eq.s32.totalorder %s17, 0
    %p44 = por %p42, %p43
    %s46 = sadd.s32 %s45, 1
    %p49 = scmp.eq.s32.totalorder %s11, 1
    %p50 = scmp.ne.s32.totalorder %s45, %s47
    %p51 = scmp.eq.s32.totalorder %s11, 0
    %p52 = por %p50, %p51
    %p53 = scmp.ne.s32.totalorder %s45, %s47
    %p54 = scmp.eq.s32.totalorder %s16, 1
    %p55 = por %p53, %p54
    %p56 = scmp.ne.s32.totalorder %s47, %s48
    %p57 = scmp.eq.s32.totalorder %s16, 0
    %p58 = por %p56, %p57
    %p59 = scmp.ne.s32.totalorder %s47, %s48
    %p60 = scmp.eq.s32.totalorder %s17, 1
    %p61 = por %p59, %p60
    %p63 = scmp.ne.s32.totalorder %s48, %s62
    %p64 = scmp.eq.s32.totalorder %s17, 0
    %p65 = por %p63, %p64
    %s67 = sadd.s32 %s66, 1
    %p70 = scmp.eq.s32.totalorder %s11, 1
    %p71 = scmp.ne.s32.totalorder %s66, %s68
    %p72 = scmp.eq.s32.totalorder %s11, 0
    %p73 = por %p71, %p72
    %p74 = scmp.ne.s32.totalorder %s66, %s68
    %p75 = scmp.eq.s32.totalorder %s16, 1
    %p76 = por %p74, %p75
    %p77 = scmp.ne.s32.totalorder %s68, %s69
    %p78 = scmp.eq.s32.totalorder %s16, 0
    %p79 = por %p77, %p78
    %p80 = scmp.ne.s32.totalorder %s68, %s69
    %p81 = scmp.eq.s32.totalorder %s17, 1
    %p82 = por %p80, %p81
    %p84 = scmp.ne.s32.totalorder %s69, %s83
    %p85 = scmp.eq.s32.totalorder %s17, 0
    %p86 = por %p84, %p85
    %s88 = sadd.s32 %s87, 1
    %p91 = scmp.eq.s32.totalorder %s11, 1
    %p92 = scmp.ne.s32.totalorder %s87, %s89
    %p93 = scmp.eq.s32.totalorder %s11, 0
    %p94 = por %p92, %p93
    %p95 = scmp.ne.s32.totalorder %s87, %s89
    %p96 = scmp.eq.s32.totalorder %s16, 1
    %p97 = por %p95, %p96
    %p98 = scmp.ne.s32.totalorder %s89, %s90
    %p99 = scmp.eq.s32.totalorder %s16, 0
    %p100 = por %p98, %p99
    %p101 = scmp.ne.s32.totalorder %s89, %s90
    %p102 = scmp.eq.s32.totalorder %s17, 1
    %p103 = por %p101, %p102
    %p105 = scmp.ne.s32.totalorder %s90, %s104
    %p106 = scmp.eq.s32.totalorder %s17, 0
    %p107 = por %p105, %p106
    %s109 = sadd.s32 %s108, 1
    %p112 = scmp.eq.s32.totalorder %s11, 1
    %p113 = scmp.ne.s32.totalorder %s108, %s110
    %p114 = scmp.eq.s32.totalorder %s11, 0
    %p115 = por %p113, %p114
    %p116 = scmp.ne.s32.totalorder %s108, %s110
    %p117 = scmp.eq.s32.totalorder %s16, 1
    %p118 = por %p116, %p117
    %p119 = scmp.ne.s32.totalorder %s110, %s111
    %p120 = scmp.eq.s32.totalorder %s16, 0
    %p121 = por %p119, %p120
    %p122 = scmp.ne.s32.totalorder %s110, %s111
    %p123 = scmp.eq.s32.totalorder %s17, 1
    %p124 = por %p122, %p123
    %p126 = scmp.ne.s32.totalorder %s111, %s125
    %p127 = scmp.eq.s32.totalorder %s17, 0
    %p128 = por %p126, %p127
    %s129 = ssub.s32 %s11, %s18
    %p130 = scmp.eq.s32.totalorder %s129, 0
    %s132 = sadd.s32 %s131, 1
    %s133 = scalar_select %p130, %s131, %s132
    %p136 = pneg %p130
    %p137 = scmp.eq.s32.totalorder %s11, 1
    %p138 = por %p136, %p137
    %p139 = scmp.ne.s32.totalorder %s131, %s134
    %p140 = scmp.eq.s32.totalorder %s11, 0
    %p141 = por %p139, %p140
    %p142 = scmp.ne.s32.totalorder %s131, %s134
    %p143 = scmp.eq.s32.totalorder %s16, 1
    %p144 = por %p142, %p143
    %p145 = scmp.ne.s32.totalorder %s134, %s135
    %p146 = scmp.eq.s32.totalorder %s16, 0
    %p147 = por %p145, %p146
    %p148 = scmp.ne.s32.totalorder %s134, %s135
    %p149 = scmp.eq.s32.totalorder %s17, 1
    %p150 = por %p148, %p149
    %p152 = scmp.ne.s32.totalorder %s135, %s151
    %p153 = scmp.eq.s32.totalorder %s17, 0
    %p154 = por %p152, %p153
    %p155 = scmp.le.s32.totalorder 1, %s11
    %p156 = scmp.lt.s32.totalorder %s11, 3
    %p157 = pnand %p155, %p156
    %p158 = pneg %p157
    // Predicated region
    $region9: #{tpu_custom_call.1} parent=5 // pred_check
      _
    $region10: #{tpu_custom_call.1} parent=5 // pred_check_branch
      %160 = sbr.rel (%p157) target = $region12
    $region11: #{tpu_custom_call.1} parent=5 // pred_region
      %s161 = ssub.s32 %s11, 1
      // Predicated region
      $region13: #{tpu_custom_call.1} parent=11 // pred_check
        %p162 = pneg %p58
      $region14: #{tpu_custom_call.1} parent=11 // pred_check_branch
        %164 = sbr.rel (%p162) target = $region16
      $region15: #{tpu_custom_call.1} parent=11 // pred_region
        _
      $region16: #{tpu_custom_call.1} parent=11 // pred_fallthru
        _
      // Predicated region
      $region17: #{tpu_custom_call.1} parent=11 // pred_check
        %p165 = pneg %p79
      $region18: #{tpu_custom_call.1} parent=11 // pred_check_branch
        %167 = sbr.rel (%p165) target = $region20
      $region19: #{tpu_custom_call.1} parent=11 // pred_region
        _
      $region20: #{tpu_custom_call.1} parent=11 // pred_fallthru
        _
      // Predicated region
      $region21: #{tpu_custom_call.1} parent=11 // pred_check
        %p168 = pneg %p100
      $region22: #{tpu_custom_call.1} parent=11 // pred_check_branch
        %170 = sbr.rel (%p168) target = $region24
      $region23: #{tpu_custom_call.1} parent=11 // pred_region
        _
      $region24: #{tpu_custom_call.1} parent=11 // pred_fallthru
        _
      // Predicated region
      $region25: #{tpu_custom_call.1} parent=11 // pred_check
        %p171 = pneg %p121
      $region26: #{tpu_custom_call.1} parent=11 // pred_check_branch
        %173 = sbr.rel (%p171) target = $region28
      $region27: #{tpu_custom_call.1} parent=11 // pred_region
        _
      $region28: #{tpu_custom_call.1} parent=11 // pred_fallthru
        _
    $region12: #{tpu_custom_call.1} parent=5 // pred_fallthru
      _
    %p174 = scmp.lt.s32.totalorder %s11, 2
    // Predicated region
    $region29: #{tpu_custom_call.1} parent=5 // pred_check
      %p175 = pneg %p174
    $region30: #{tpu_custom_call.1} parent=5 // pred_check_branch
      %177 = sbr.rel (%p175) target = $region32
    $region31: #{tpu_custom_call.1} parent=5 // pred_region
      // Predicated region
      $region33: #{tpu_custom_call.1} parent=31 // pred_check
        %p178 = pneg %p31
      $region34: #{tpu_custom_call.1} parent=31 // pred_check_branch
        %180 = sbr.rel (%p178) target = $region36
      $region35: #{tpu_custom_call.1} parent=31 // pred_region
        %s181 = smul.u32 19, %s11
        %p182 = scmp.lt.s32.totalorder %s181, 37
        %s183 = scalar_select %p182, %s181, 37
        %s184 = smul.addr %s183, 8
        %s185 = scalar_lea.vmem %s0, %s184
        %s186 = smul.u32 19, %s11
      $region36: #{tpu_custom_call.1} parent=31 // pred_fallthru
        _
    $region32: #{tpu_custom_call.1} parent=5 // pred_fallthru
      _
    %p187 = scmp.le.s32.totalorder 1, %s11
    %p188 = scmp.lt.s32.totalorder %s11, 3
    %p189 = pnand %p187, %p188
    %p190 = pneg %p189
    // Predicated region
    $region37: #{tpu_custom_call.1} parent=5 // pred_check
      _
    $region38: #{tpu_custom_call.1} parent=5 // pred_check_branch
      %192 = sbr.rel (%p189) target = $region40
    $region39: #{tpu_custom_call.1} parent=5 // pred_region
      %s193 = ssub.s32 %s11, 1
      %s194 = smul.u32 19, %s16
      %p195 = scmp.lt.s32.totalorder %s194, 37
      %s196 = scalar_select %p195, %s194, 37
      %s197 = smul.addr %s196, 8
      %s198 = scalar_lea.vmem %s0, %s197
      %p199 = pneg %p37
      %p200 = pneg %p34
      %p201 = pneg %p58
      %p202 = pneg %p55
      %p203 = pneg %p79
      %p204 = pneg %p76
      %p205 = pneg %p100
      %p206 = pneg %p97
      %p207 = pneg %p121
      %p208 = pneg %p118
      %p209 = pneg %p147
      %p210 = pneg %p144
      %s211 = smul.u32 19, %s16
      %p212 = scmp.lt.s32.totalorder %s211, 37
      %s213 = scalar_select %p212, %s211, 37
      %s214 = smul.addr %s213, 8
      %s215 = scalar_lea.vmem %s5, %s214
      %s216 = smul.u32 19, %s16
      %p217 = scmp.lt.s32.totalorder %s216, 37
      %s218 = scalar_select %p217, %s216, 37
      %s219 = smul.addr %s218, 8
      %s220 = scalar_lea.vmem %s0, %s219
      %s221 = smul.u32 19, %s16
      %s222 = smul.u32 19, %s16
      %p223 = scmp.lt.s32.totalorder %s222, 37
      %s224 = scalar_select %p223, %s222, 37
      %s225 = smul.addr %s224, 8
      %s226 = scalar_lea.vmem %s5, %s225
      %s227 = smul.u32 19, %s16
      %v229 = vld [vmem:[%s220] sm:$0xff]
      %v230 = vld [vmem:[%s220 + $0x8] sm:$0xff]
      %v231 = vld [vmem:[%s220 + $0x10] sm:$0xff]
      %v232 = vld [vmem:[%s220 + $0x18] sm:$0xff]
      %v233 = vld [vmem:[%s220 + $0x20] sm:$0xff]
      %v234 = vld [vmem:[%s220 + $0x28] sm:$0xff]
      %v235 = vld [vmem:[%s220 + $0x30] sm:$0xff]
      %v236 = vld [vmem:[%s220 + $0x38] sm:$0xff]
      %v237 = vld [vmem:[%s220 + $0x40] sm:$0xff]
      %v238 = vld [vmem:[%s220 + $0x48] sm:$0xff]
      %v239 = vld [vmem:[%s220 + $0x50] sm:$0xff]
      %v240 = vld [vmem:[%s220 + $0x58] sm:$0xff]
      %v241 = vld [vmem:[%s220 + $0x60] sm:$0xff]
      %v242 = vld [vmem:[%s220 + $0x68] sm:$0xff]
      %v243 = vld [vmem:[%s220 + $0x70] sm:$0xff]
      %v244 = vld [vmem:[%s220 + $0x78] sm:$0xff]
      %v245 = vld [vmem:[%s220 + $0x80] sm:$0xff]
      %v246 = vld [vmem:[%s220 + $0x88] sm:$0xff]
      %v247 = vld [vmem:[%s220 + $0x90] sm:$0xff]
      %v248 = vpack.c.bf16 %v230, %v229
      %v249 = vpack.c.bf16 %v232, %v231
      %v250 = vpack.c.bf16 %v234, %v233
      %v251 = vpack.c.bf16 %v236, %v235
      %v252 = vpack.c.bf16 %v238, %v237
      %v253 = vpack.c.bf16 %v240, %v239
      %v254 = vpack.c.bf16 %v242, %v241
      %v255 = vpack.c.bf16 %v244, %v243
      %v256 = vpack.c.bf16 %v246, %v245
      %v257 = vpack.c.bf16 %v247, %v247
      %v258 = vld [vmem:[%s1] sm:$0xf]
      %v259 = vld [vmem:[%s1 + $0x4] sm:$0xf]
      %v260 = vld [vmem:[%s1 + $0x8] sm:$0xf]
      %v261 = vld [vmem:[%s1 + $0xc] sm:$0xf]
      %v262 = vld [vmem:[%s2] sm:$0x1]
      %v264 = vperm.slane %v262, 0
      %v270 = vunpack.c.l.b16 %v258
      %v271 = vunpack.c.l.b16 %v259
      %v272 = vunpack.c.l.b16 %v260
      %v273 = vunpack.c.l.b16 %v261
      %v274 = vpack.c.b16 %v271, %v270
      %v275 = vpack.c.b16 %v273, %v272
      %vm278 = vcmask 261120
      %v280 = vsel %vm278, %v248, 0
      %v283 = vsel %vm278, %v249, 0
      %v286 = vsel %vm278, %v250, 0
      %v289 = vsel %vm278, %v251, 0
      %v292 = vsel %vm278, %v252, 0
      %v295 = vsel %vm278, %v253, 0
      %v298 = vsel %vm278, %v254, 0
      %v301 = vsel %vm278, %v255, 0
      %v304 = vsel %vm278, %v256, 0
      %v307 = vsel %vm278, %v257, 0
      %309 = vmatpush.bf16.msra.mxu0 0
      %310 = vmatpush.bf16.msra.mxu0 0
      %311 = vmatpush.bf16.msra.mxu0 0
      %312 = vmatpush.bf16.msra.mxu0 0
      %313 = vmatpush.bf16.msra.mxu0 0
      %314 = vmatpush.bf16.msra.mxu0 0
      %315 = vmatpush.bf16.msra.mxu0 %v275
      %316 = vmatpush.bf16.msra.mxu0 %v274
      %317 = vmatmul.bf16.gmra.mxu0 %v280
      %v318 = vpop.f32.mrf.mxu0
      %v319 = vadd.f32 %v264, %v318
      %v320 = vpop.f32.mrf.mxu0
      %v321 = vadd.f32 %v264, %v320
      %322 = vmatmul.bf16.gmra.mxu0 %v283
      %v323 = vpop.f32.mrf.mxu0
      %v324 = vadd.f32 %v264, %v323
      %v325 = vpop.f32.mrf.mxu0
      %v326 = vadd.f32 %v264, %v325
      %327 = vmatmul.bf16.gmra.mxu0 %v286
      %v328 = vpop.f32.mrf.mxu0
      %v329 = vadd.f32 %v264, %v328
      %v330 = vpop.f32.mrf.mxu0
      %v331 = vadd.f32 %v264, %v330
      %332 = vmatmul.bf16.gmra.mxu0 %v289
      %v333 = vpop.f32.mrf.mxu0
      %v334 = vadd.f32 %v264, %v333
      %v335 = vpop.f32.mrf.mxu0
      %v336 = vadd.f32 %v264, %v335
      %337 = vmatmul.bf16.gmra.mxu0 %v292
      %v338 = vpop.f32.mrf.mxu0
      %v339 = vadd.f32 %v264, %v338
      %v340 = vpop.f32.mrf.mxu0
      %v341 = vadd.f32 %v264, %v340
      %342 = vmatmul.bf16.gmra.mxu0 %v295
      %v343 = vpop.f32.mrf.mxu0
      %v344 = vadd.f32 %v264, %v343
      %v345 = vpop.f32.mrf.mxu0
      %v346 = vadd.f32 %v264, %v345
      %347 = vmatmul.bf16.gmra.mxu0 %v298
      %v348 = vpop.f32.mrf.mxu0
      %v349 = vadd.f32 %v264, %v348
      %v350 = vpop.f32.mrf.mxu0
      %v351 = vadd.f32 %v264, %v350
      %352 = vmatmul.bf16.gmra.mxu0 %v301
      %v353 = vpop.f32.mrf.mxu0
      %v354 = vadd.f32 %v264, %v353
      %v355 = vpop.f32.mrf.mxu0
      %v356 = vadd.f32 %v264, %v355
      %357 = vmatmul.bf16.gmra.mxu0 %v304
      %v358 = vpop.f32.mrf.mxu0
      %v359 = vadd.f32 %v264, %v358
      %v360 = vpop.f32.mrf.mxu0
      %v361 = vadd.f32 %v264, %v360
      %362 = vmatmul.bf16.gmra.mxu0 %v307
      %v363 = vpop.f32.mrf.mxu0
      %v364 = vadd.f32 %v264, %v363
      %v365 = vpop.f32.mrf.mxu0
      %366 = vdwg.mxu0
      %v367 = vmax.f32 %v319, 0.0
      %v368 = vmax.f32 %v321, 0.0
      %v369 = vmax.f32 %v324, 0.0
      %v370 = vmax.f32 %v326, 0.0
      %v371 = vmax.f32 %v329, 0.0
      %v372 = vmax.f32 %v331, 0.0
      %v373 = vmax.f32 %v334, 0.0
      %v374 = vmax.f32 %v336, 0.0
      %v375 = vmax.f32 %v339, 0.0
      %v376 = vmax.f32 %v341, 0.0
      %v377 = vmax.f32 %v344, 0.0
      %v378 = vmax.f32 %v346, 0.0
      %v379 = vmax.f32 %v349, 0.0
      %v380 = vmax.f32 %v351, 0.0
      %v381 = vmax.f32 %v354, 0.0
      %v382 = vmax.f32 %v356, 0.0
      %v383 = vmax.f32 %v359, 0.0
      %v384 = vmax.f32 %v361, 0.0
      %v385 = vmax.f32 %v364, 0.0
      %v386 = vpack.c.bf16 %v368, %v367
      %v387 = vpack.c.bf16 %v370, %v369
      %v388 = vpack.c.bf16 %v372, %v371
      %v389 = vpack.c.bf16 %v374, %v373
      %v390 = vpack.c.bf16 %v376, %v375
      %v391 = vpack.c.bf16 %v378, %v377
      %v392 = vpack.c.bf16 %v380, %v379
      %v393 = vpack.c.bf16 %v382, %v381
      %v394 = vpack.c.bf16 %v384, %v383
      %v395 = vpack.c.bf16 %v385, %v385
      %v396 = vld [vmem:[%s3] sm:$0xf]
      %v397 = vld [vmem:[%s3 + $0x4] sm:$0xf]
      %v398 = vld [vmem:[%s3 + $0x8] sm:$0xf]
      %v399 = vld [vmem:[%s3 + $0xc] sm:$0xf]
      %v400 = vld [vmem:[%s3 + $0x10] sm:$0xf]
      %v401 = vld [vmem:[%s3 + $0x14] sm:$0xf]
      %v402 = vld [vmem:[%s3 + $0x18] sm:$0xf]
      %v403 = vld [vmem:[%s3 + $0x1c] sm:$0xf]
      %v404 = vld [vmem:[%s4] sm:$0x1]
      %v406 = vperm.slane %v404, 0
      %v416 = vunpack.c.l.b16 %v396
      %v417 = vunpack.c.l.b16 %v397
      %v418 = vunpack.c.l.b16 %v398
      %v419 = vunpack.c.l.b16 %v399
      %v420 = vunpack.c.l.b16 %v400
      %v421 = vunpack.c.l.b16 %v401
      %v422 = vunpack.c.l.b16 %v402
      %v423 = vunpack.c.l.b16 %v403
      %v424 = vpack.c.b16 %v417, %v416
      %v425 = vpack.c.b16 %v419, %v418
      %v426 = vpack.c.b16 %v421, %v420
      %v427 = vpack.c.b16 %v423, %v422
      %vm432 = vcmask 523264
      %v434 = vsel %vm432, %v386, 0
      %v437 = vsel %vm432, %v387, 0
      %v440 = vsel %vm432, %v388, 0
      %v443 = vsel %vm432, %v389, 0
      %v446 = vsel %vm432, %v390, 0
      %v449 = vsel %vm432, %v391, 0
      %v452 = vsel %vm432, %v392, 0
      %v455 = vsel %vm432, %v393, 0
      %v458 = vsel %vm432, %v394, 0
      %v461 = vsel %vm432, %v395, 0
      %463 = vmatpush.bf16.msra.mxu0 0
      %464 = vmatpush.bf16.msra.mxu0 0
      %465 = vmatpush.bf16.msra.mxu0 0
      %466 = vmatpush.bf16.msra.mxu0 0
      %467 = vmatpush.bf16.msra.mxu0 %v427
      %468 = vmatpush.bf16.msra.mxu0 %v426
      %469 = vmatpush.bf16.msra.mxu0 %v425
      %470 = vmatpush.bf16.msra.mxu0 %v424
      %471 = vmatmul.bf16.gmra.mxu0 %v434
      %v472 = vpop.f32.mrf.mxu0
      %v473 = vadd.f32 %v406, %v472
      %v474 = vpop.f32.mrf.mxu0
      %v475 = vadd.f32 %v406, %v474
      %476 = vmatmul.bf16.gmra.mxu0 %v437
      %v477 = vpop.f32.mrf.mxu0
      %v478 = vadd.f32 %v406, %v477
      %v479 = vpop.f32.mrf.mxu0
      %v480 = vadd.f32 %v406, %v479
      %481 = vmatmul.bf16.gmra.mxu0 %v440
      %v482 = vpop.f32.mrf.mxu0
      %v483 = vadd.f32 %v406, %v482
      %v484 = vpop.f32.mrf.mxu0
      %v485 = vadd.f32 %v406, %v484
      %486 = vmatmul.bf16.gmra.mxu0 %v443
      %v487 = vpop.f32.mrf.mxu0
      %v488 = vadd.f32 %v406, %v487
      %v489 = vpop.f32.mrf.mxu0
      %v490 = vadd.f32 %v406, %v489
      %491 = vmatmul.bf16.gmra.mxu0 %v446
      %v492 = vpop.f32.mrf.mxu0
      %v493 = vadd.f32 %v406, %v492
      %v494 = vpop.f32.mrf.mxu0
      %v495 = vadd.f32 %v406, %v494
      %496 = vmatmul.bf16.gmra.mxu0 %v449
      %v497 = vpop.f32.mrf.mxu0
      %v498 = vadd.f32 %v406, %v497
      %v499 = vpop.f32.mrf.mxu0
      %v500 = vadd.f32 %v406, %v499
      %501 = vmatmul.bf16.gmra.mxu0 %v452
      %v502 = vpop.f32.mrf.mxu0
      %v503 = vadd.f32 %v406, %v502
      %v504 = vpop.f32.mrf.mxu0
      %v505 = vadd.f32 %v406, %v504
      %506 = vmatmul.bf16.gmra.mxu0 %v455
      %v507 = vpop.f32.mrf.mxu0
      %v508 = vadd.f32 %v406, %v507
      %v509 = vpop.f32.mrf.mxu0
      %v510 = vadd.f32 %v406, %v509
      %511 = vmatmul.bf16.gmra.mxu0 %v458
      %v512 = vpop.f32.mrf.mxu0
      %v513 = vadd.f32 %v406, %v512
      %v514 = vpop.f32.mrf.mxu0
      %v515 = vadd.f32 %v406, %v514
      %516 = vmatmul.bf16.gmra.mxu0 %v461
      %v517 = vpop.f32.mrf.mxu0
      %v518 = vadd.f32 %v406, %v517
      %v519 = vpop.f32.mrf.mxu0
      %520 = vdwg.mxu0
      %v521 = vmax.f32 %v473, 0.0
      %v522 = vmax.f32 %v475, 0.0
      %v523 = vmax.f32 %v478, 0.0
      %v524 = vmax.f32 %v480, 0.0
      %v525 = vmax.f32 %v483, 0.0
      %v526 = vmax.f32 %v485, 0.0
      %v527 = vmax.f32 %v488, 0.0
      %v528 = vmax.f32 %v490, 0.0
      %v529 = vmax.f32 %v493, 0.0
      %v530 = vmax.f32 %v495, 0.0
      %v531 = vmax.f32 %v498, 0.0
      %v532 = vmax.f32 %v500, 0.0
      %v533 = vmax.f32 %v503, 0.0
      %v534 = vmax.f32 %v505, 0.0
      %v535 = vmax.f32 %v508, 0.0
      %v536 = vmax.f32 %v510, 0.0
      %v537 = vmax.f32 %v513, 0.0
      %v538 = vmax.f32 %v515, 0.0
      %v539 = vmax.f32 %v518, 0.0
      %vm540 = vcmask 130048
      %541 = vst.msk [vmem:[%s226] sm:$0xff] %vm540, %v521
      %542 = vst.msk [vmem:[%s226 + $0x8] sm:$0xff] %vm540, %v522
      %543 = vst.msk [vmem:[%s226 + $0x10] sm:$0xff] %vm540, %v523
      %544 = vst.msk [vmem:[%s226 + $0x18] sm:$0xff] %vm540, %v524
      %545 = vst.msk [vmem:[%s226 + $0x20] sm:$0xff] %vm540, %v525
      %546 = vst.msk [vmem:[%s226 + $0x28] sm:$0xff] %vm540, %v526
      %547 = vst.msk [vmem:[%s226 + $0x30] sm:$0xff] %vm540, %v527
      %548 = vst.msk [vmem:[%s226 + $0x38] sm:$0xff] %vm540, %v528
      %549 = vst.msk [vmem:[%s226 + $0x40] sm:$0xff] %vm540, %v529
      %550 = vst.msk [vmem:[%s226 + $0x48] sm:$0xff] %vm540, %v530
      %551 = vst.msk [vmem:[%s226 + $0x50] sm:$0xff] %vm540, %v531
      %552 = vst.msk [vmem:[%s226 + $0x58] sm:$0xff] %vm540, %v532
      %553 = vst.msk [vmem:[%s226 + $0x60] sm:$0xff] %vm540, %v533
      %554 = vst.msk [vmem:[%s226 + $0x68] sm:$0xff] %vm540, %v534
      %555 = vst.msk [vmem:[%s226 + $0x70] sm:$0xff] %vm540, %v535
      %556 = vst.msk [vmem:[%s226 + $0x78] sm:$0xff] %vm540, %v536
      %557 = vst.msk [vmem:[%s226 + $0x80] sm:$0xff] %vm540, %v537
      %558 = vst.msk [vmem:[%s226 + $0x88] sm:$0xff] %vm540, %v538
      %559 = vst.msk [vmem:[%s226 + $0x90] sm:$0xff] %vm540, %v539
      %s560 = smul.u32 19, %s16
      %p561 = scmp.lt.s32.totalorder %s560, 37
      %s562 = scalar_select %p561, %s560, 37
      %s563 = smul.addr %s562, 8
      %s564 = scalar_lea.vmem %s5, %s563
      // Predicated region
      $region41: #{tpu_custom_call.1} parent=39 // pred_check
        %p565 = pneg %p144
      $region42: #{tpu_custom_call.1} parent=39 // pred_check_branch
        %567 = sbr.rel (%p565) target = $region44
      $region43: #{tpu_custom_call.1} parent=39 // pred_region
        %s568 = smul.u32 19, %s16
      $region44: #{tpu_custom_call.1} parent=39 // pred_fallthru
        _
    $region40: #{tpu_custom_call.1} parent=5 // pred_fallthru
      _
    %p569 = scmp.le.s32.totalorder 2, %s11
    // Predicated region
    $region45: #{tpu_custom_call.1} parent=5 // pred_check
      %p570 = pneg %p569
    $region46: #{tpu_custom_call.1} parent=5 // pred_check_branch
      %572 = sbr.rel (%p570) target = $region48
    $region47: #{tpu_custom_call.1} parent=5 // pred_region
      %s573 = ssub.s32 %s11, 2
      // Predicated region
      $region49: #{tpu_custom_call.1} parent=47 // pred_check
        %p574 = pneg %p150
      $region50: #{tpu_custom_call.1} parent=47 // pred_check_branch
        %576 = sbr.rel (%p574) target = $region52
      $region51: #{tpu_custom_call.1} parent=47 // pred_region
        %s577 = smul.u32 19, %s17
        %p578 = scmp.lt.s32.totalorder %s577, 37
        %s579 = scalar_select %p578, %s577, 37
        %s580 = smul.addr %s579, 8
        %s581 = scalar_lea.vmem %s5, %s580
      $region52: #{tpu_custom_call.1} parent=47 // pred_fallthru
        _
    $region48: #{tpu_custom_call.1} parent=5 // pred_fallthru
      _
  $region6: #{tpu_custom_call.1} parent=0 // loop_footer
    %s15 = sadd.s32 1, %s11
  $region7: #{tpu_custom_call.1} parent=0 // loop_footer_branch
    %10 = sbr.rel target = $region3
  $region8: #{tpu_custom_call.1} parent=0 // loop_exit
    _

</llo_original>
